<compile_context>
chip_gen: v7x
topology: tpu7x:2x2x1
jax: 0.10.0
libtpu: 0.0.40
codegen_flags: <defaults>
</compile_context>

<pallas_src>
import functools

import jax
import jax.numpy as jnp
from jax.experimental import pallas as pl
from jax.experimental.pallas import tpu as pltpu

_LANE = 128
_SUBLANE = 8


def _cdiv(a, b):
    return -(-a // b)


def _lsce_kernel(logits_ref, label_ref, out_ref, *,
                 lb_pos, lb_neg, ignore_index,
                 c_total, tc, s_total, ts, ragged_c, ragged_s):
    cb = pl.program_id(2)                                # class-block index (reduction axis)

    x = logits_ref[0].astype(jnp.float32)                # (tc, ts); cast in-kernel (VPU, free-ish)
    lbl = label_ref[0]                                   # (1, ts) int32

    # Smoothed one-hot from a class-axis iota (global class id = local + cb*tc);
    # lbl broadcasts over the class axis.
    cls = jax.lax.broadcasted_iota(jnp.int32, x.shape, 0) + cb * tc
    one_hot = jnp.where(cls == lbl, jnp.float32(lb_pos), jnp.float32(lb_neg))

    # torch.log(logits) -- NOT log_softmax (matches the module verbatim).
    contrib = jnp.log(x) * one_hot                       # (tc, ts) f32
    if ragged_c:
        # Last class block overhangs C: data there is undefined (NaN-able) ->
        # select it away element-wise before the class-axis reduce.
        contrib = jnp.where(cls < c_total, contrib, 0.0)
    col_loss = jnp.sum(contrib, axis=0, keepdims=True)   # (1, ts)

    keep = lbl != ignore_index                           # (1, ts) valid columns
    if ragged_s:
        # Mask the out-of-range tail of the last spatial block.
        col = (jax.lax.broadcasted_iota(jnp.int32, (1, ts), 1)
               + pl.program_id(1) * ts)
        keep = jnp.logical_and(keep, col < s_total)
    col_loss = jnp.where(keep, col_loss, 0.0)            # loss[ignore] = 0 (NaNs confined)

    block_loss = -jnp.sum(col_loss)                      # scalar f32

    # Packed per-(n, sb) partials in one (8,128)-aligned f32 tile:
    #   row 0 = loss_sum, row 1 = n_valid (exact: per-block count << 2^24).
    # Output block index is constant across cb -> tile stays resident in VMEM
    # and acts as the accumulator over the class-axis grid dimension.
    row = jax.lax.broadcasted_iota(jnp.int32, out_ref.shape, 2)

    @pl.when(cb == 0)
    def _():
        cnt = jnp.sum(keep.astype(jnp.float32))
        out_ref[...] = jnp.where(row == 1, cnt, 0.0).astype(jnp.float32)

    out_ref[...] += jnp.where(row == 0, block_loss, 0.0).astype(jnp.float32)


def _select_tiles(N, C, S, itemsize, budget_bytes, max_block_bytes,
                  block_spatial, block_classes):
    """Pick (tc, ts) so the REAL VMEM footprint fits `budget_bytes`:
       2x double-buffered (tc,ts) logits + 2x (1->8 sublane padded) int32 label
       tile + ~3 (tc,ts) f32 in-kernel temporaries."""
    def per_lane_bytes(tc):
        return tc * (2 * itemsize + 3 * 4) + 2 * _SUBLANE * 4

    min_lanes = min(S, 2048)          # >=2048-lane floor keeps DMA segments >= 8 KB

    # ---- class tile ----
    if block_classes is not None:     # explicit override (mainly for tests)
        tc = C if int(block_classes) >= C else max(
            _SUBLANE, (int(block_classes) // _SUBLANE) * _SUBLANE)
    elif per_lane_bytes(C) * min_lanes <= budget_bytes:
        tc = C                        # full class axis in one block (fast path)
    else:                             # vocab-style large C: tile the class axis
        tc = (budget_bytes // min_lanes - 2 * _SUBLANE * 4) // (2 * itemsize + 3 * 4)
        tc = max(_SUBLANE, min(C, (int(tc) // _SUBLANE) * _SUBLANE))

    # ---- spatial tile ----
    ts = budget_bytes // per_lane_bytes(tc)
    ts = min(ts, max(_LANE, max_block_bytes // max(1, tc * itemsize)))
    if block_spatial is not None:
        ts = min(ts, int(block_spatial))
    if ts >= S:
        ts = S                        # full-dim block (always legal)
    else:
        ts = max(_LANE, (int(ts) // _LANE) * _LANE)   # lane-aligned partial block

    # ---- megacore load balance (v7x: 2 TCs/chip; harmless elsewhere) ----
    if block_spatial is None and S > _LANE:
        n_sb = _cdiv(S, ts)
        if N * n_sb < 4:
            want = _cdiv(4, N)                          # spatial blocks per batch row
            ts_bal = max(_LANE, _cdiv(_cdiv(S, want), _LANE) * _LANE)
            ts = min(ts, ts_bal)

    return int(tc), int(ts), _cdiv(S, ts), _cdiv(C, tc)


def label_smooth_ce_v1(logits, label, *, lb_smooth=0.1, reduction="mean",
                       ignore_index=-100, block_spatial=None, block_classes=None):
    """logits: (N, C, *spatial) float (any dtype); label: (N, *spatial) int.
    block_spatial / block_classes are test-only overrides of the auto tiling."""
    if logits.ndim < 2:
        raise ValueError("logits must have at least 2 dims (N, C, ...)")
    N, C = int(logits.shape[0]), int(logits.shape[1])
    S = 1
    for d in logits.shape[2:]:
        S *= int(d)

    x = logits.reshape(N, C, S)                          # free reshape, native dtype
    lbl = label.reshape(N, 1, S).astype(jnp.int32)

    itemsize = jnp.dtype(logits.dtype).itemsize

    # Generation-aware VMEM budget (v7x has only 64 MiB/TC physical).
    try:
        vmem_cap = int(pltpu.get_tpu_info().vmem_capacity_bytes)
    except Exception:
        vmem_cap = 64 * 1024 * 1024
    vmem_limit = int(min(48 * 1024 * 1024, max(16 * 1024 * 1024, vmem_cap // 2)))
    budget = vmem_limit - 4 * 1024 * 1024                # headroom for Mosaic internals

    tc, ts, n_sb, n_cb = _select_tiles(
        N, C, S, itemsize, budget, 4 * 1024 * 1024, block_spatial, block_classes)
    ragged_s = (S % ts) != 0
    ragged_c = (C % tc) != 0

    kernel = functools.partial(
        _lsce_kernel, lb_pos=1.0 - lb_smooth, lb_neg=lb_smooth / C,
        ignore_index=ignore_index, c_total=C, tc=tc, s_total=S, ts=ts,
        ragged_c=ragged_c, ragged_s=ragged_s)

    part_shape = (N, n_sb, _SUBLANE, _LANE)
    cost = pl.CostEstimate(
        flops=4 * N * S * C,
        transcendentals=N * S * C,
        bytes_accessed=N * C * S * itemsize + N * S * 4
                       + N * n_sb * _SUBLANE * _LANE * 4)

    part = pl.pallas_call(
        kernel,
        out_shape=jax.ShapeDtypeStruct(part_shape, jnp.float32),
        grid_spec=pltpu.PrefetchScalarGridSpec(
            num_scalar_prefetch=0,
            grid=(N, n_sb, n_cb),                        # reduction (class) axis last
            in_specs=[pl.BlockSpec((1, tc, ts), lambda n, sb, cb: (n, cb, sb)),
                      pl.BlockSpec((1, 1, ts), lambda n, sb, cb: (n, 0, sb))],
            out_specs=pl.BlockSpec((1, 1, _SUBLANE, _LANE),
                                   lambda n, sb, cb: (n, sb, 0, 0))),
        compiler_params=pltpu.CompilerParams(
            dimension_semantics=("parallel", "parallel", "arbitrary"),
            vmem_limit_bytes=vmem_limit),
        cost_estimate=cost,
    )(x, lbl)

    loss_sum = jnp.sum(part[:, :, 0, 0])
    # Per-block counts are exact integers in f32; cast then sum exactly in int32.
    # TODO(synk): n_valid overflows int32 if total valid positions exceed 2^31.
    n_valid = jnp.sum(part[:, :, 1, 0].astype(jnp.int32))
    if reduction == "mean":
        # Matches torch: every label == ignore_index -> 0/0 -> NaN.
        return loss_sum / n_valid.astype(jnp.float32)
    if reduction == "sum":
        return loss_sum
    # TODO(synk): reduction='none' (per-position (N, *spatial) loss map) not wired up.
    raise NotImplementedError("reduction='none' not implemented")


def _reference(logits, label, lb_smooth=0.1, ignore_index=-100, reduction="mean"):
    """Pure-JAX replica of the PyTorch forward."""
    logits = logits.astype(jnp.float32)
    C = logits.shape[1]
    ignore = label == ignore_index
    n_valid = jnp.sum(~ignore)
    lbl = jnp.where(ignore, 0, label)
    lb_pos, lb_neg = 1.0 - lb_smooth, lb_smooth / C
    one_hot = jax.nn.one_hot(lbl, C, axis=1) * (lb_pos - lb_neg) + lb_neg
    loss = -jnp.sum(jnp.log(logits) * one_hot, axis=1)
    loss = jnp.where(ignore, 0.0, loss)
    if reduction == "mean":
        return loss.sum() / n_valid
    return loss.sum()


if __name__ == "__main__":
    key = jax.random.PRNGKey(0)
    k1, k2, k3 = jax.random.split(key, 3)

    # Case 1: f32 NCHW, single block per batch element (full-dim spatial tile).
    N, C, H, W = 2, 16, 8, 8
    logits = jax.random.uniform(k1, (N, C, H, W), jnp.float32, minval=0.1, maxval=2.0)
    label = jax.random.randint(k2, (N, H, W), 0, C, dtype=jnp.int32)
    label = jnp.where(jax.random.uniform(k3, (N, H, W)) < 0.2, -100, label)

    loss = jax.block_until_ready(label_smooth_ce_v1(logits, label))
    ref = _reference(logits, label)
    assert jnp.allclose(loss, ref, rtol=1e-4, atol=1e-5), (loss, ref)

    # Case 1b: 'sum' reduction.
    loss_s = jax.block_until_ready(label_smooth_ce_v1(logits, label, reduction="sum"))
    ref_s = _reference(logits, label, reduction="sum")
    assert jnp.allclose(loss_s, ref_s, rtol=1e-4, atol=1e-4), (loss_s, ref_s)

    # Case 2: native bf16 input (cast happens in-kernel, not in the wrapper).
    loss_bf16 = jax.block_until_ready(
        label_smooth_ce_v1(logits.astype(jnp.bfloat16), label))
    ref_bf16 = _reference(logits.astype(jnp.bfloat16), label)
    assert jnp.allclose(loss_bf16, ref_bf16, rtol=1e-4, atol=1e-5), (loss_bf16, ref_bf16)

    # Case 3: ragged spatial tiling (C=19, S=144, ts=128 -> masked tail block).
    k4, k5, k6 = jax.random.split(jax.random.PRNGKey(1), 3)
    N2, C2, H2, W2 = 2, 19, 12, 12
    logits2 = jax.random.uniform(k4, (N2, C2, H2, W2), jnp.float32, minval=0.1, maxval=2.0)
    label2 = jax.random.randint(k5, (N2, H2, W2), 0, C2, dtype=jnp.int32)
    label2 = jnp.where(jax.random.uniform(k6, (N2, H2, W2)) < 0.2, -100, label2)

    loss2 = jax.block_until_ready(
        label_smooth_ce_v1(logits2, label2, block_spatial=128))
    ref2 = _reference(logits2, label2)
    assert jnp.allclose(loss2, ref2, rtol=1e-4, atol=1e-5), (loss2, ref2)

    # Case 4: class-axis tiling (tc=8, n_cb=3, ragged class tail) + ragged spatial.
    loss3 = jax.block_until_ready(
        label_smooth_ce_v1(logits2, label2, block_spatial=128, block_classes=8))
    assert jnp.allclose(loss3, ref2, rtol=1e-4, atol=1e-5), (loss3, ref2)

    # Case 5: auto tiling with megacore balancing (S=1024 split into 2 blocks/row).
    k7, k8, k9 = jax.random.split(jax.random.PRNGKey(2), 3)
    N3, C3, H3, W3 = 2, 8, 32, 32
    logits3 = jax.random.uniform(k7, (N3, C3, H3, W3), jnp.float32, minval=0.1, maxval=2.0)
    label3 = jax.random.randint(k8, (N3, H3, W3), 0, C3, dtype=jnp.int32)
    label3 = jnp.where(jax.random.uniform(k9, (N3, H3, W3)) < 0.2, -100, label3)

    loss4 = jax.block_until_ready(label_smooth_ce_v1(logits3, label3))
    ref4 = _reference(logits3, label3)
    assert jnp.allclose(loss4, ref4, rtol=1e-4, atol=1e-5), (loss4, ref4)

    print("KERNEL_OK")
</pallas_src>

<mosaic_0001>
module attributes {stable_mosaic.version = 11 : i64} {
  func.func @_lsce_kernel(%arg0: i32, %arg1: i32, %arg2: i32, %arg3: memref<1x16x64xf32, #tpu.memory_space<vmem>>, %arg4: memref<1x1x64xi32, #tpu.memory_space<vmem>>, %arg5: memref<1x1x8x128xf32, #tpu.memory_space<vmem>>) attributes {dimension_semantics = [#tpu.dimension_semantics<parallel>, #tpu.dimension_semantics<parallel>, #tpu.dimension_semantics<arbitrary>], iteration_bounds = array<i64: 2, 1, 1>, scalar_prefetch = 0 : i64, scratch_operands = 0 : i64, tpu.core_type = #tpu.core_type<tc>, window_params = [{transform_indices = @transform_0, window_bounds = array<i64: 1, 16, 64>}, {transform_indices = @transform_1, window_bounds = array<i64: 1, 1, 64>}, {transform_indices = @transform_2, window_bounds = array<i64: 1, 1, 8, 128>}]} {
    %c0 = arith.constant 0 : index
    %c0_0 = arith.constant 0 : index
    %c0_1 = arith.constant 0 : index
    %0 = vector.load %arg3[%c0, %c0_0, %c0_1] : memref<1x16x64xf32, #tpu.memory_space<vmem>>, vector<1x16x64xf32>
    %1 = vector.shape_cast %0 : vector<1x16x64xf32> to vector<16x64xf32>
    %c0_2 = arith.constant 0 : index
    %c0_3 = arith.constant 0 : index
    %c0_4 = arith.constant 0 : index
    %2 = vector.load %arg4[%c0_2, %c0_3, %c0_4] : memref<1x1x64xi32, #tpu.memory_space<vmem>>, vector<1x1x64xi32>
    %3 = vector.shape_cast %2 : vector<1x1x64xi32> to vector<1x64xi32>
    %4 = tpu.iota {dimensions = array<i32: 0>} : vector<16x64xi32>
    %c16_i32 = arith.constant 16 : i32
    %5 = arith.muli %arg2, %c16_i32 : i32
    %6 = vector.broadcast %5 : i32 to vector<16x64xi32>
    %7 = arith.addi %4, %6 : vector<16x64xi32>
    %8 = vector.broadcast %3 : vector<1x64xi32> to vector<16x64xi32>
    %9 = arith.cmpi eq, %7, %8 : vector<16x64xi32>
    %cst = arith.constant 0.899999976 : f32
    %cst_5 = arith.constant 6.250000e-03 : f32
    %10 = vector.broadcast %cst : f32 to vector<16x64xf32>
    %11 = vector.broadcast %cst_5 : f32 to vector<16x64xf32>
    %12 = arith.select %9, %10, %11 : vector<16x64xi1>, vector<16x64xf32>
    %13 = math.log %1 : vector<16x64xf32>
    %14 = arith.mulf %13, %12 : vector<16x64xf32>
    %cst_6 = arith.constant dense<0.000000e+00> : vector<64xf32>
    %15 = vector.multi_reduction <add>, %14, %cst_6 [0] : vector<16x64xf32> to vector<64xf32>
    %16 = vector.shape_cast %15 : vector<64xf32> to vector<1x64xf32>
    %c-100_i32 = arith.constant -100 : i32
    %17 = vector.broadcast %c-100_i32 : i32 to vector<1x64xi32>
    %18 = arith.cmpi ne, %3, %17 : vector<1x64xi32>
    %cst_7 = arith.constant 0.000000e+00 : f32
    %19 = vector.broadcast %cst_7 : f32 to vector<1x64xf32>
    %20 = arith.select %18, %16, %19 : vector<1x64xi1>, vector<1x64xf32>
    %21 = vector.shape_cast %20 : vector<1x64xf32> to vector<1x1x64xf32>
    %cst_8 = arith.constant dense<0.000000e+00> : vector<1xf32>
    %22 = vector.multi_reduction <add>, %21, %cst_8 [1, 2] : vector<1x1x64xf32> to vector<1xf32>
    %23 = vector.shape_cast %22 : vector<1xf32> to vector<1x1x1xf32>
    %24 = vector.extract %23[0, 0, 0] : f32 from vector<1x1x1xf32>
    %cst_9 = arith.constant 0.000000e+00 : f32
    %25 = arith.subf %cst_9, %24 : f32
    %26 = tpu.iota {dimensions = array<i32: 2>} : vector<1x1x8x128xi32>
    %c0_i32 = arith.constant 0 : i32
    %27 = arith.cmpi eq, %arg2, %c0_i32 : i32
    %28 = arith.extui %27 : i1 to i32
    %c0_i32_10 = arith.constant 0 : i32
    %29 = arith.cmpi ne, %28, %c0_i32_10 : i32
    scf.if %29 {
      %38 = arith.extui %18 : vector<1x64xi1> to vector<1x64xi32>
      %39 = arith.sitofp %38 : vector<1x64xi32> to vector<1x64xf32>
      %40 = vector.shape_cast %39 : vector<1x64xf32> to vector<1x1x64xf32>
      %cst_21 = arith.constant dense<0.000000e+00> : vector<1xf32>
      %41 = vector.multi_reduction <add>, %40, %cst_21 [1, 2] : vector<1x1x64xf32> to vector<1xf32>
      %42 = vector.shape_cast %41 : vector<1xf32> to vector<1x1x1xf32>
      %43 = vector.extract %42[0, 0, 0] : f32 from vector<1x1x1xf32>
      %c1_i32 = arith.constant 1 : i32
      %44 = vector.broadcast %c1_i32 : i32 to vector<1x1x8x128xi32>
      %45 = arith.cmpi eq, %26, %44 : vector<1x1x8x128xi32>
      %cst_22 = arith.constant 0.000000e+00 : f32
      %46 = vector.broadcast %43 : f32 to vector<1x1x8x128xf32>
      %47 = vector.broadcast %cst_22 : f32 to vector<1x1x8x128xf32>
      %48 = arith.select %45, %46, %47 : vector<1x1x8x128xi1>, vector<1x1x8x128xf32>
      %c0_23 = arith.constant 0 : index
      %c0_24 = arith.constant 0 : index
      %c0_25 = arith.constant 0 : index
      %c0_26 = arith.constant 0 : index
      %49 = vector.load %arg5[%c0_23, %c0_24, %c0_25, %c0_26] : memref<1x1x8x128xf32, #tpu.memory_space<vmem>>, vector<1x1x8x128xf32>
      tpu.vector_store %arg5[%c0_23, %c0_24, %c0_25, %c0_26], %48 {strides = array<i32>} : memref<1x1x8x128xf32, #tpu.memory_space<vmem>>, vector<1x1x8x128xf32>,
    } else {
    }
    %c0_11 = arith.constant 0 : index
    %c0_12 = arith.constant 0 : index
    %c0_13 = arith.constant 0 : index
    %c0_14 = arith.constant 0 : index
    %30 = vector.load %arg5[%c0_11, %c0_12, %c0_13, %c0_14] : memref<1x1x8x128xf32, #tpu.memory_space<vmem>>, vector<1x1x8x128xf32>
    %c0_i32_15 = arith.constant 0 : i32
    %31 = vector.broadcast %c0_i32_15 : i32 to vector<1x1x8x128xi32>
    %32 = arith.cmpi eq, %26, %31 : vector<1x1x8x128xi32>
    %cst_16 = arith.constant 0.000000e+00 : f32
    %33 = vector.broadcast %25 : f32 to vector<1x1x8x128xf32>
    %34 = vector.broadcast %cst_16 : f32 to vector<1x1x8x128xf32>
    %35 = arith.select %32, %33, %34 : vector<1x1x8x128xi1>, vector<1x1x8x128xf32>
    %36 = arith.addf %30, %35 : vector<1x1x8x128xf32>
    %c0_17 = arith.constant 0 : index
    %c0_18 = arith.constant 0 : index
    %c0_19 = arith.constant 0 : index
    %c0_20 = arith.constant 0 : index
    %37 = vector.load %arg5[%c0_17, %c0_18, %c0_19, %c0_20] : memref<1x1x8x128xf32, #tpu.memory_space<vmem>>, vector<1x1x8x128xf32>
    tpu.vector_store %arg5[%c0_17, %c0_18, %c0_19, %c0_20], %36 {strides = array<i32>} : memref<1x1x8x128xf32, #tpu.memory_space<vmem>>, vector<1x1x8x128xf32>,
    return
  }
  func.func @transform_0(%arg0: i32, %arg1: i32, %arg2: i32) -> (i32, i32, i32) {
    %c0_i32 = arith.constant 0 : i32
    return %arg0, %arg2, %arg1 : i32, i32, i32
  }
  func.func @transform_1(%arg0: i32, %arg1: i32, %arg2: i32) -> (i32, i32, i32) {
    %c0_i32 = arith.constant 0 : i32
    %c0_i32_0 = arith.constant 0 : i32
    return %arg0, %c0_i32, %arg1 : i32, i32, i32
  }
  func.func @transform_2(%arg0: i32, %arg1: i32, %arg2: i32) -> (i32, i32, i32, i32) {
    %c0_i32 = arith.constant 0 : i32
    %c0_i32_0 = arith.constant 0 : i32
    %c0_i32_1 = arith.constant 0 : i32
    return %arg0, %arg1, %c0_i32, %c0_i32_0 : i32, i32, i32, i32
  }
}

</mosaic_0001>

<llo_original>
// kernel: tpu_custom_call.1
$region0: #{tpu_custom_call.1}
  #allocation0 [shape = 'u32[]', space=smem, size = 0x4, offset = 0x4, fixed_abs, tag = 'smem constant byte address 0x4 - core index']
  #allocation1 [shape = 'u32[144,128]{1,0:T(1,128)}', space=vmem, size = 0x12000, scoped, tag = 'internal scratch']
  %s0 = inlined_call_operand.hbm [shape: f32[2,16,64], index: 0, kind: input, shape index: {}]
  %s1 = inlined_call_operand.vmem [shape: s32[2,1,64], index: 1, kind: input, shape index: {}]
  %s2 = inlined_call_operand.hbm [shape: f32[2,1,8,128], index: 2, kind: output, shape index: {}]
  %s3 = sld [smem:[#allocation0]]
  $region49: #{tpu_custom_call.1} parent=0
    _
  %s5 = ssub.s32 1, %s3
  %s6 = scalar_select 0, %s5, %s3
  $region1: #{tpu_custom_call.1} parent=0
    #allocation2 [shape = 'u8[16384]{0}', space=vmem, size = 0x4000, scoped, tag = 'input window, operand 0']
    #allocation3 [shape = 's32[2]{0}', space=sflag, size = 0x8, scoped, tag = 'scoped memory for tpu_custom_call.1']
    #allocation4 [shape = 's32[2]{0}', space=sflag, size = 0x8, scoped, tag = 'scoped memory for tpu_custom_call.1']
    #allocation5 [shape = 'u8[8192]{0}', space=vmem, size = 0x2000, scoped, tag = 'output window, operand 0']
    %7 = vsyncpa [#allocation3], 0
    %s8 = scalar_lea.sflag [#allocation3], 1
    %9 = vsyncpa %s8, 0
    %10 = vsyncpa [#allocation4], 0
    %s11 = scalar_lea.sflag [#allocation4], 1
    %12 = vsyncpa %s11, 0
    loop: start=0, step=1, limit=4
    $region2: #{tpu_custom_call.1} parent=1 // loop_pre_header
      _
    $region3: #{tpu_custom_call.1} parent=1 // loop_header
      %s14 = sphi 0, %s18
      %p15 = scmp.ge.s32.totalorder %s14, 4
      %s21 = sphi 0, %s40
      %s22 = sphi 0, %s36
      %s23 = sphi 0, %s32
      %s24 = sphi 0, %s21
      %s25 = sphi 0, %s22
      %s26 = sphi 0, %s23
      %s27 = sphi 0, %s24
      %s28 = sphi 0, %s25
      %s29 = sphi 0, %s26
      %s47 = sphi 0, %s49
      %s50 = sphi 0, %s47
      %s51 = sphi 0, %s50
      %s67 = sphi 0, %s51
      %s75 = sphi 0, %s77
      %s78 = sphi 0, %s75
      %s79 = sphi 0, %s78
      %s95 = sphi 0, %s79
      %s103 = sphi 0, %s105
      %s106 = sphi 0, %s103
      %s107 = sphi 0, %s106
      %s123 = sphi 0, %s107
    $region4: #{tpu_custom_call.1} parent=1 // loop_header_branch
      %17 = sbr.rel (%p15) target = $region8
    $region5: #{tpu_custom_call.1} parent=1 // loop_body
      %s19 = ssub.s32 %s14, 1
      %s20 = ssub.s32 %s14, 2
      %s30 = sadd.s32 1, %s23
      %p31 = scmp.ge.s32.totalorder %s30, 1
      %s32 = scalar_select %p31, 0, %s30
      %s33 = sadd.s32 1, %s22
      %s34 = scalar_select %p31, %s33, %s22
      %p35 = scmp.ge.s32.totalorder %s34, 1
      %s36 = scalar_select %p35, 0, %s34
      %s37 = sadd.s32 1, %s21
      %s38 = scalar_select %p35, %s37, %s21
      %p39 = scmp.ge.s32.totalorder %s38, 2
      %s40 = scalar_select %p39, 0, %s38
      %s41 = ssub.s32 %s21, %s40
      %s42 = ssub.s32 %s23, %s32
      %s43 = sor.u32 %s41, %s42
      %s44 = ssub.s32 %s22, %s36
      %s45 = sor.u32 %s43, %s44
      %p46 = scmp.eq.s32.totalorder %s45, 0
      %s48 = sadd.s32 %s47, 1
      %s49 = scalar_select %p46, %s47, %s48
      %p52 = pneg %p46
      %p53 = scmp.eq.s32.totalorder %s14, 1
      %p54 = por %p52, %p53
      %p55 = scmp.ne.s32.totalorder %s47, %s50
      %p56 = scmp.eq.s32.totalorder %s14, 0
      %p57 = por %p55, %p56
      %p58 = scmp.ne.s32.totalorder %s47, %s50
      %p59 = scmp.eq.s32.totalorder %s19, 1
      %p60 = por %p58, %p59
      %p61 = scmp.ne.s32.totalorder %s50, %s51
      %p62 = scmp.eq.s32.totalorder %s19, 0
      %p63 = por %p61, %p62
      %p64 = scmp.ne.s32.totalorder %s50, %s51
      %p65 = scmp.eq.s32.totalorder %s20, 1
      %p66 = por %p64, %p65
      %p68 = scmp.ne.s32.totalorder %s51, %s67
      %p69 = scmp.eq.s32.totalorder %s20, 0
      %p70 = por %p68, %p69
      %s71 = ssub.s32 %s21, %s40
      %s72 = ssub.s32 %s22, %s36
      %s73 = sor.u32 %s71, %s72
      %p74 = scmp.eq.s32.totalorder %s73, 0
      %s76 = sadd.s32 %s75, 1
      %s77 = scalar_select %p74, %s75, %s76
      %p80 = pneg %p74
      %p81 = scmp.eq.s32.totalorder %s14, 1
      %p82 = por %p80, %p81
      %p83 = scmp.ne.s32.totalorder %s75, %s78
      %p84 = scmp.eq.s32.totalorder %s14, 0
      %p85 = por %p83, %p84
      %p86 = scmp.ne.s32.totalorder %s75, %s78
      %p87 = scmp.eq.s32.totalorder %s19, 1
      %p88 = por %p86, %p87
      %p89 = scmp.ne.s32.totalorder %s78, %s79
      %p90 = scmp.eq.s32.totalorder %s19, 0
      %p91 = por %p89, %p90
      %p92 = scmp.ne.s32.totalorder %s78, %s79
      %p93 = scmp.eq.s32.totalorder %s20, 1
      %p94 = por %p92, %p93
      %p96 = scmp.ne.s32.totalorder %s79, %s95
      %p97 = scmp.eq.s32.totalorder %s20, 0
      %p98 = por %p96, %p97
      %s99 = ssub.s32 %s21, %s40
      %s100 = ssub.s32 %s22, %s36
      %s101 = sor.u32 %s99, %s100
      %p102 = scmp.eq.s32.totalorder %s101, 0
      %s104 = sadd.s32 %s103, 1
      %s105 = scalar_select %p102, %s103, %s104
      %p108 = pneg %p102
      %p109 = scmp.eq.s32.totalorder %s14, 1
      %p110 = por %p108, %p109
      %p111 = scmp.ne.s32.totalorder %s103, %s106
      %p112 = scmp.eq.s32.totalorder %s14, 0
      %p113 = por %p111, %p112
      %p114 = scmp.ne.s32.totalorder %s103, %s106
      %p115 = scmp.eq.s32.totalorder %s19, 1
      %p116 = por %p114, %p115
      %p117 = scmp.ne.s32.totalorder %s106, %s107
      %p118 = scmp.eq.s32.totalorder %s19, 0
      %p119 = por %p117, %p118
      %p120 = scmp.ne.s32.totalorder %s106, %s107
      %p121 = scmp.eq.s32.totalorder %s20, 1
      %p122 = por %p120, %p121
      %p124 = scmp.ne.s32.totalorder %s107, %s123
      %p125 = scmp.eq.s32.totalorder %s20, 0
      %p126 = por %p124, %p125
      %p127 = scmp.le.s32.totalorder 1, %s14
      %p128 = scmp.lt.s32.totalorder %s14, 3
      %p129 = pnand %p127, %p128
      %p130 = pneg %p129
      // Predicated region
      $region9: #{tpu_custom_call.1} parent=5 // pred_check
        _
      $region10: #{tpu_custom_call.1} parent=5 // pred_check_branch
        %132 = sbr.rel (%p129) target = $region12
      $region11: #{tpu_custom_call.1} parent=5 // pred_region
        %s133 = ssub.s32 %s14, 1
      $region12: #{tpu_custom_call.1} parent=5 // pred_fallthru
        _
      %p134 = scmp.lt.s32.totalorder %s14, 2
      // Predicated region
      $region13: #{tpu_custom_call.1} parent=5 // pred_check
        %p135 = pneg %p134
      $region14: #{tpu_custom_call.1} parent=5 // pred_check_branch
        %137 = sbr.rel (%p135) target = $region16
      $region15: #{tpu_custom_call.1} parent=5 // pred_region
        // Predicated region
        $region17: #{tpu_custom_call.1} parent=15 // pred_check
          %p138 = pneg %p57
        $region18: #{tpu_custom_call.1} parent=15 // pred_check_branch
          %140 = sbr.rel (%p138) target = $region20
        $region19: #{tpu_custom_call.1} parent=15 // pred_region
          %s141 = sand.u32 %s47, 1
          %s142 = scalar_lea.sflag [#allocation3], %s141
          %s143 = sand.u32 %s47, 1
          %s144 = smul.addr %s143, 16
          %s145 = scalar_lea.vmem [#allocation2], %s144
          %s146 = smul.u32 2, %s23
          %s148 = ssub.s32 256, 256
          %149 = vsyncadd %s142, %s148
          %s150 = sadd.s32 %s22, %s146
          %s151 = smul.addr %s21, 2
          %s152 = sadd.s32 %s150, %s151
          %s153 = smul.addr %s152, 128
          %s154 = scalar_lea.hbm %s0, %s153
          %s155 = sshll.u32 %s145, 4
          %s156 = int_to_ptr.vmem [resolvable:$true] %s155
          %161 = dma.hbm_to_vmem [thread:$0]  %s154, 256, %s156, %s142, 128, 128, 8
        $region20: #{tpu_custom_call.1} parent=15 // pred_fallthru
          _
        // Predicated region
        $region21: #{tpu_custom_call.1} parent=15 // pred_check
          %p162 = pneg %p85
        $region22: #{tpu_custom_call.1} parent=15 // pred_check_branch
          %164 = sbr.rel (%p162) target = $region24
        $region23: #{tpu_custom_call.1} parent=15 // pred_region
          %p165 = scmp.lt.s32.totalorder %s21, 1
          %s166 = scalar_select %p165, %s21, 1
          %p167 = scmp.lt.s32.totalorder %s22, 0
          %s168 = scalar_select %p167, %s22, 0
          %s169 = sadd.s32 %s168, %s166
          %s170 = scalar_lea.vmem %s1, %s169
        $region24: #{tpu_custom_call.1} parent=15 // pred_fallthru
          _
      $region16: #{tpu_custom_call.1} parent=5 // pred_fallthru
        _
      %p171 = scmp.le.s32.totalorder 1, %s14
      %p172 = scmp.lt.s32.totalorder %s14, 3
      %p173 = pnand %p171, %p172
      %p174 = pneg %p173
      // Predicated region
      $region25: #{tpu_custom_call.1} parent=5 // pred_check
        _
      $region26: #{tpu_custom_call.1} parent=5 // pred_check_branch
        %176 = sbr.rel (%p173) target = $region28
      $region27: #{tpu_custom_call.1} parent=5 // pred_region
        %s177 = ssub.s32 %s14, 1
        %s178 = sand.u32 %s50, 1
        %s179 = scalar_lea.sflag [#allocation3], %s178
        %s180 = sand.u32 %s50, 1
        %s181 = smul.addr %s180, 16
        %s182 = scalar_lea.vmem [#allocation2], %s181
        // Predicated region
        $region29: #{tpu_custom_call.1} parent=27 // pred_check
          %p183 = pneg %p63
        $region30: #{tpu_custom_call.1} parent=27 // pred_check_branch
          %185 = sbr.rel (%p183) target = $region32
        $region31: #{tpu_custom_call.1} parent=27 // pred_region
          %186 = dma.done %s179, 256
        $region32: #{tpu_custom_call.1} parent=27 // pred_fallthru
          _
        %s187 = sand.u32 %s50, 1
        %s188 = scalar_lea.sflag [#allocation3], %s187
        %s189 = sand.u32 %s50, 1
        %s190 = smul.addr %s189, 16
        %s191 = scalar_lea.vmem [#allocation2], %s190
        %p192 = pneg %p63
        %p193 = pneg %p60
        %p194 = scmp.lt.s32.totalorder %s24, 1
        %s195 = scalar_select %p194, %s24, 1
        %p196 = scmp.lt.s32.totalorder %s25, 0
        %s197 = scalar_select %p196, %s25, 0
        %s198 = sadd.s32 %s197, %s195
        %s199 = scalar_lea.vmem %s1, %s198
        %p200 = pneg %p91
        %p201 = pneg %p88
        %p202 = pneg %p119
        %p203 = pneg %p116
        %s204 = sand.u32 %s106, 1
        %s205 = scalar_lea.sflag [#allocation4], %s204
        %s206 = sand.u32 %s106, 1
        %s207 = smul.addr %s206, 8
        %s208 = scalar_lea.vmem [#allocation5], %s207
        %s209 = smul.u32 2, %s26
        %p210 = scmp.lt.s32.totalorder %s24, 1
        %s211 = scalar_select %p210, %s24, 1
        %p212 = scmp.lt.s32.totalorder %s25, 0
        %s213 = scalar_select %p212, %s25, 0
        %s214 = sadd.s32 %s213, %s211
        %s215 = scalar_lea.vmem %s1, %s214
        %v216 = vld [vmem:[%s182] sm:$0xff]
        %v217 = vld [vmem:[%s182 + $0x8] sm:$0xff]
        %v218 = vld [vmem:[%s215] sm:$0x1]
        %v219 = vlaneseq
        %v220 = vshrl.u32 %v219, 7
        %v221 = vadd.s32 %v220, 8
        %s222 = smul.u32 %s26, 16
        %v223 = vstv %s222
        %v224 = vadd.s32 %v220, %v223
        %v225 = vadd.s32 %v221, %v223
        %v226 = vlaneseq
        %v227 = vshrl.u32 %v226, 7
        %v228 = vsub.s32 0, %v227
        %v229 = vrot.slane %v218, %v228
        %vm230 = vcmp.eq.s32.totalorder %v224, %v229
        %vm231 = vcmp.eq.s32.totalorder %v225, %v229
        %v232 = vsel %vm230, 0.9, 0.00625
        %v233 = vsel %vm231, 0.9, 0.00625
        %v234 = vlog2.pop %v216
        %v235 = vmul.f32 %v234, 0.6931472
        %v236 = vlog2.pop %v217
        %v237 = vmul.f32 %v236, 0.6931472
        %v238 = vmul.f32 %v235, %v232
        %v239 = vmul.f32 %v237, %v233
        %vm240 = vcmask 523264
        %v241 = vsel %vm240, %v238, 0.0
        %v242 = vsel %vm240, %v239, 0.0
        %v243 = vadd.f32 %v241, %v242
        %v244 = vrot.slane %v243, 4
        %v245 = vadd.f32 %v243, %v244
        %v246 = vrot.slane %v245, 2
        %v247 = vadd.f32 %v245, %v246
        %v248 = vrot.slane %v247, 1
        %v249 = vadd.f32 %v247, %v248
        %vm250 = vcmp.ne.s32.totalorder %v218, 4294967196
        %v251 = vsel %vm250, %v249, 0.0
        %vm252 = vcmask 516096
        %v253 = vsel %vm252, %v251, 0.0
        %254 = vadd.xlane.f32.xlu0 %v253
        %v255 = vpop.xlane.xlu0 %254
        %v256 = vrot.slane %v255, 4
        %v257 = vadd.f32 %v255, %v256
        %v258 = vrot.slane %v257, 2
        %v259 = vadd.f32 %v257, %v258
        %v260 = vrot.slane %v259, 1
        %v261 = vadd.f32 %v259, %v260
        %s262 = vtos %v261
        %s263 = ssub.f32 0.0, %s262
        %p264 = scmp.eq.s32.totalorder %s26, 0
        // Predicated region
        $region33: #{tpu_custom_call.1} parent=27 // pred_check
          %p265 = pneg %p264
        $region34: #{tpu_custom_call.1} parent=27 // pred_check_branch
          %267 = sbr.rel (%p265) target = $region36
        $region35: #{tpu_custom_call.1} parent=27 // pred_region
          %v268 = vsel %vm250, 1, 0
          %v269 = vcvt.s32.f32 %v268
          %v270 = vsel %vm252, %v269, 0.0
          %271 = vadd.xlane.f32.xlu0 %v270
          %v272 = vpop.xlane.xlu0 %271
          %v273 = vrot.slane %v272, 4
          %v274 = vadd.f32 %v272, %v273
          %v275 = vrot.slane %v274, 2
          %v276 = vadd.f32 %v274, %v275
          %v277 = vrot.slane %v276, 1
          %v278 = vadd.f32 %v276, %v277
          %s279 = vtos %v278
          %vm280 = vcmp.eq.s32.totalorder %v220, 1
          %v281 = vstv %s279
          %v282 = vsel %vm280, %v281, 0.0
          %283 = vst [vmem:[%s208] sm:$0xff] %v282
        $region36: #{tpu_custom_call.1} parent=27 // pred_fallthru
          _
        %v284 = vld [vmem:[%s208] sm:$0xff]
        %vm285 = vcmp.eq.s32.totalorder %v220, 0
        %v286 = vstv %s263
        %v287 = vsel %vm285, %v286, 0.0
        %v288 = vadd.f32 %v284, %v287
        %289 = vst [vmem:[%s208] sm:$0xff] %v288
        %s290 = sand.u32 %s106, 1
        %s291 = scalar_lea.sflag [#allocation4], %s290
        %s292 = sand.u32 %s106, 1
        %s293 = smul.addr %s292, 8
        %s294 = scalar_lea.vmem [#allocation5], %s293
        // Predicated region
        $region37: #{tpu_custom_call.1} parent=27 // pred_check
          %p295 = pneg %p116
        $region38: #{tpu_custom_call.1} parent=27 // pred_check_branch
          %297 = sbr.rel (%p295) target = $region40
        $region39: #{tpu_custom_call.1} parent=27 // pred_region
          %s299 = ssub.s32 128, 128
          %300 = vsyncadd %s291, %s299
          %s301 = sadd.s32 %s25, %s24
          %s302 = smul.addr %s301, 128
          %s303 = scalar_lea.hbm %s2, %s302
          %s305 = sshll.u32 %s294, 4
          %s306 = int_to_ptr.vmem [resolvable:$true] %s305
          %308 = dma.vmem_to_hbm [thread:$0]  %s306, 128, %s303, %s291
        $region40: #{tpu_custom_call.1} parent=27 // pred_fallthru
          _
      $region28: #{tpu_custom_call.1} parent=5 // pred_fallthru
        _
      %p309 = scmp.le.s32.totalorder 2, %s14
      // Predicated region
      $region41: #{tpu_custom_call.1} parent=5 // pred_check
        %p310 = pneg %p309
      $region42: #{tpu_custom_call.1} parent=5 // pred_check_branch
        %312 = sbr.rel (%p310) target = $region44
      $region43: #{tpu_custom_call.1} parent=5 // pred_region
        %s313 = ssub.s32 %s14, 2
        // Predicated region
        $region45: #{tpu_custom_call.1} parent=43 // pred_check
          %p314 = pneg %p122
        $region46: #{tpu_custom_call.1} parent=43 // pred_check_branch
          %316 = sbr.rel (%p314) target = $region48
        $region47: #{tpu_custom_call.1} parent=43 // pred_region
          %s317 = sand.u32 %s107, 1
          %s318 = scalar_lea.sflag [#allocation4], %s317
          %s319 = sand.u32 %s107, 1
          %s320 = smul.addr %s319, 8
          %s321 = scalar_lea.vmem [#allocation5], %s320
          %322 = dma.done %s318, 128
        $region48: #{tpu_custom_call.1} parent=43 // pred_fallthru
          _
      $region44: #{tpu_custom_call.1} parent=5 // pred_fallthru
        _
    $region6: #{tpu_custom_call.1} parent=1 // loop_footer
      %s18 = sadd.s32 1, %s14
    $region7: #{tpu_custom_call.1} parent=1 // loop_footer_branch
      %13 = sbr.rel target = $region3
    $region8: #{tpu_custom_call.1} parent=1 // loop_exit
      _
    %323 = vsyncpa [#allocation3], 1
    %s324 = scalar_lea.sflag [#allocation3], 1
    %325 = vsyncpa %s324, 1
    %326 = vsyncpa [#allocation4], 1
    %s327 = scalar_lea.sflag [#allocation4], 1
    %328 = vsyncpa %s327, 1

</llo_original>
